<compile_context>
chip_gen: v7x
topology: tpu7x:2x2x1
jax: 0.10.0
libtpu: 0.0.40
codegen_flags: <defaults>
</compile_context>

<pallas_src>
import functools

import jax
import jax.numpy as jnp
from jax.experimental import pallas as pl
from jax.experimental.pallas import tpu as pltpu


# ----------------------------------------------------------------------------
# Kernel: whole forward pass fused (3 matmuls + bias + ReLU, all in VMEM).
# ----------------------------------------------------------------------------
def autoencoder_kernel(x_ref,
                       w1_ref, b1_ref,
                       w2_ref, b2_ref,
                       w34_ref, b34_ref,
                       out_ref):
    # encoder_layer1 + ReLU  (bf16 MXU inputs, f32 accumulation / elementwise)
    x = x_ref[...].astype(jnp.bfloat16)
    h = jnp.dot(x, w1_ref[...], preferred_element_type=jnp.float32) + b1_ref[...]
    h = jnp.maximum(h, 0.0)

    # encoder_layer2 + ReLU
    h = jnp.dot(h.astype(jnp.bfloat16), w2_ref[...],
                preferred_element_type=jnp.float32) + b2_ref[...]
    h = jnp.maximum(h, 0.0)

    # decoder_layer2 + decoder_layer3 folded into one matmul (no activation
    # between them in the reference forward, so the fold is exact).
    h = jnp.dot(h.astype(jnp.bfloat16), w34_ref[...],
                preferred_element_type=jnp.float32) + b34_ref[...]

    out_ref[...] = h.astype(out_ref.dtype)


# ----------------------------------------------------------------------------
# Wrapper: tiles over batch; weights/biases stay resident across grid steps.
# ----------------------------------------------------------------------------
@functools.partial(jax.jit, static_argnames=("batch_tile",))
def autoencoder_forward(x, w1, b1, w2, b2, w3, b3, w4, b4, *, batch_tile=256):
    B, D = x.shape
    batch_tile = min(batch_tile, B)
    assert B % batch_tile == 0, "batch must be divisible by batch_tile"
    assert batch_tile % 8 == 0, "batch_tile must be a multiple of 8 (sublanes)"

    # --- fold decoder layers (exact: Linear(Linear(h)) with no activation) ---
    w3f = w3.astype(jnp.float32)
    w4f = w4.astype(jnp.float32)
    w34 = w3f @ w4f                                        # (128, 64)
    b34 = b3.astype(jnp.float32) @ w4f + b4.astype(jnp.float32)  # (1, 64)

    # --- bf16 weights for the MXU; biases stay f32 for the VPU ---------------
    w1b = w1.astype(jnp.bfloat16)
    w2b = w2.astype(jnp.bfloat16)
    w34b = w34.astype(jnp.bfloat16)
    b1f = b1.astype(jnp.float32)
    b2f = b2.astype(jnp.float32)
    b34f = b34.astype(jnp.float32)

    full = lambda a: pl.BlockSpec(a.shape, lambda i: (0,) * a.ndim)

    # Advisory cost estimate (post-fold FLOPs, HBM traffic).
    flops = 2 * B * (D * 256 + 256 * 128 + 128 * D)
    bytes_accessed = (
        B * D * x.dtype.itemsize          # x
        + B * D * x.dtype.itemsize        # out
        + 2 * (w1b.size + w2b.size + w34b.size)   # bf16 weights
        + 4 * (b1f.size + b2f.size + b34f.size)   # f32 biases
    )
    cost = pl.CostEstimate(flops=flops, transcendentals=0,
                           bytes_accessed=bytes_accessed)

    return pl.pallas_call(
        autoencoder_kernel,
        out_shape=jax.ShapeDtypeStruct((B, D), x.dtype),
        grid=(B // batch_tile,),
        in_specs=[
            pl.BlockSpec((batch_tile, D), lambda i: (i, 0)),   # x tile
            full(w1b), full(b1f),
            full(w2b), full(b2f),
            full(w34b), full(b34f),
        ],
        out_specs=pl.BlockSpec((batch_tile, D), lambda i: (i, 0)),
        compiler_params=pltpu.CompilerParams(
            dimension_semantics=("parallel",)),
        cost_estimate=cost,
    )(x, w1b, b1f, w2b, b2f, w34b, b34f)


# ----------------------------------------------------------------------------
# Deterministic parameter init (PyTorch nn.Linear default: U(+/- 1/sqrt(in)))
# ----------------------------------------------------------------------------
def init_linear(key, in_f, out_f, dtype=jnp.float32):
    kw, kb = jax.random.split(key)
    bound = 1.0 / jnp.sqrt(jnp.float32(in_f))
    # stored already transposed: (in_features, out_features)
    w = jax.random.uniform(kw, (in_f, out_f), dtype, minval=-bound, maxval=bound)
    b = jax.random.uniform(kb, (1, out_f), dtype, minval=-bound, maxval=bound)
    return w, b


def reference_forward(x, w1, b1, w2, b2, w3, b3, w4, b4):
    h = jnp.maximum(x @ w1 + b1, 0.0)
    h = jnp.maximum(h @ w2 + b2, 0.0)
    h = h @ w3 + b3
    return h @ w4 + b4


if __name__ == "__main__":
    INPUT_DIM = 64
    BATCH = 512          # -> grid of 2 parallel steps at batch_tile=256

    key = jax.random.PRNGKey(0)
    k_x, k1, k2, k3, k4 = jax.random.split(key, 5)

    x = jax.random.normal(k_x, (BATCH, INPUT_DIM), jnp.float32)

    w1, b1 = init_linear(k1, INPUT_DIM, 256)   # encoder_layer1
    w2, b2 = init_linear(k2, 256, 128)         # encoder_layer2
    w3, b3 = init_linear(k3, 128, 256)         # decoder_layer2
    w4, b4 = init_linear(k4, 256, INPUT_DIM)   # decoder_layer3

    out = autoencoder_forward(x, w1, b1, w2, b2, w3, b3, w4, b4,
                              batch_tile=256)
    out = jax.block_until_ready(out)

    ref = reference_forward(x, w1, b1, w2, b2, w3, b3, w4, b4)
    assert out.shape == (BATCH, INPUT_DIM)
    # bf16 MXU inputs + folded decoder change rounding slightly vs the f32
    # unfused reference -> loosened tolerance.
    assert jnp.allclose(out, ref, atol=5e-2, rtol=5e-2), "mismatch vs reference"

    print("KERNEL_OK")
</pallas_src>

<mosaic_0001>
module attributes {stable_mosaic.version = 11 : i64} {
  func.func @autoencoder_kernel(%arg0: i32, %arg1: memref<256x64xf32, #tpu.memory_space<vmem>>, %arg2: memref<64x256xbf16, #tpu.memory_space<vmem>>, %arg3: memref<1x256xf32, #tpu.memory_space<vmem>>, %arg4: memref<256x128xbf16, #tpu.memory_space<vmem>>, %arg5: memref<1x128xf32, #tpu.memory_space<vmem>>, %arg6: memref<128x64xbf16, #tpu.memory_space<vmem>>, %arg7: memref<1x64xf32, #tpu.memory_space<vmem>>, %arg8: memref<256x64xf32, #tpu.memory_space<vmem>>) attributes {dimension_semantics = [#tpu.dimension_semantics<parallel>], iteration_bounds = array<i64: 2>, scalar_prefetch = 0 : i64, scratch_operands = 0 : i64, tpu.core_type = #tpu.core_type<tc>, window_params = [{transform_indices = @transform_0, window_bounds = array<i64: 256, 64>}, {pipeline_mode = #tpu.pipeline_mode<synchronous>, transform_indices = @transform_1, window_bounds = array<i64: 64, 256>}, {pipeline_mode = #tpu.pipeline_mode<synchronous>, transform_indices = @transform_2, window_bounds = array<i64: 1, 256>}, {pipeline_mode = #tpu.pipeline_mode<synchronous>, transform_indices = @transform_3, window_bounds = array<i64: 256, 128>}, {pipeline_mode = #tpu.pipeline_mode<synchronous>, transform_indices = @transform_4, window_bounds = array<i64: 1, 128>}, {pipeline_mode = #tpu.pipeline_mode<synchronous>, transform_indices = @transform_5, window_bounds = array<i64: 128, 64>}, {pipeline_mode = #tpu.pipeline_mode<synchronous>, transform_indices = @transform_6, window_bounds = array<i64: 1, 64>}, {transform_indices = @transform_7, window_bounds = array<i64: 256, 64>}]} {
    %c0 = arith.constant 0 : index
    %c0_0 = arith.constant 0 : index
    %0 = vector.load %arg1[%c0, %c0_0] : memref<256x64xf32, #tpu.memory_space<vmem>>, vector<256x64xf32>
    %1 = arith.truncf %0 : vector<256x64xf32> to vector<256x64xbf16>
    %c0_1 = arith.constant 0 : index
    %c0_2 = arith.constant 0 : index
    %2 = vector.load %arg2[%c0_1, %c0_2] : memref<64x256xbf16, #tpu.memory_space<vmem>>, vector<64x256xbf16>
    %cst = arith.constant dense<0.000000e+00> : vector<256x256xf32>
    %3 = tpu.matmul %1, %2, %cst {dimension_numbers = #tpu.dot_dimension_numbers<[1], [0], [0], [1], [0, 0, 1, 1], [], []>} : vector<256x64xbf16>, vector<64x256xbf16>, vector<256x256xf32> -> vector<256x256xf32>
    %c0_3 = arith.constant 0 : index
    %c0_4 = arith.constant 0 : index
    %4 = vector.load %arg3[%c0_3, %c0_4] : memref<1x256xf32, #tpu.memory_space<vmem>>, vector<1x256xf32>
    %5 = vector.broadcast %4 : vector<1x256xf32> to vector<256x256xf32>
    %6 = arith.addf %3, %5 : vector<256x256xf32>
    %cst_5 = arith.constant 0.000000e+00 : f32
    %7 = vector.broadcast %cst_5 : f32 to vector<256x256xf32>
    %8 = arith.maximumf %6, %7 : vector<256x256xf32>
    %9 = arith.truncf %8 : vector<256x256xf32> to vector<256x256xbf16>
    %c0_6 = arith.constant 0 : index
    %c0_7 = arith.constant 0 : index
    %10 = vector.load %arg4[%c0_6, %c0_7] : memref<256x128xbf16, #tpu.memory_space<vmem>>, vector<256x128xbf16>
    %cst_8 = arith.constant dense<0.000000e+00> : vector<256x128xf32>
    %11 = tpu.matmul %9, %10, %cst_8 {dimension_numbers = #tpu.dot_dimension_numbers<[1], [0], [0], [1], [0, 0, 1, 1], [], []>} : vector<256x256xbf16>, vector<256x128xbf16>, vector<256x128xf32> -> vector<256x128xf32>
    %c0_9 = arith.constant 0 : index
    %c0_10 = arith.constant 0 : index
    %12 = vector.load %arg5[%c0_9, %c0_10] : memref<1x128xf32, #tpu.memory_space<vmem>>, vector<1x128xf32>
    %13 = vector.broadcast %12 : vector<1x128xf32> to vector<256x128xf32>
    %14 = arith.addf %11, %13 : vector<256x128xf32>
    %cst_11 = arith.constant 0.000000e+00 : f32
    %15 = vector.broadcast %cst_11 : f32 to vector<256x128xf32>
    %16 = arith.maximumf %14, %15 : vector<256x128xf32>
    %17 = arith.truncf %16 : vector<256x128xf32> to vector<256x128xbf16>
    %c0_12 = arith.constant 0 : index
    %c0_13 = arith.constant 0 : index
    %18 = vector.load %arg6[%c0_12, %c0_13] : memref<128x64xbf16, #tpu.memory_space<vmem>>, vector<128x64xbf16>
    %cst_14 = arith.constant dense<0.000000e+00> : vector<256x64xf32>
    %19 = tpu.matmul %17, %18, %cst_14 {dimension_numbers = #tpu.dot_dimension_numbers<[1], [0], [0], [1], [0, 0, 1, 1], [], []>} : vector<256x128xbf16>, vector<128x64xbf16>, vector<256x64xf32> -> vector<256x64xf32>
    %c0_15 = arith.constant 0 : index
    %c0_16 = arith.constant 0 : index
    %20 = vector.load %arg7[%c0_15, %c0_16] : memref<1x64xf32, #tpu.memory_space<vmem>>, vector<1x64xf32>
    %21 = vector.broadcast %20 : vector<1x64xf32> to vector<256x64xf32>
    %22 = arith.addf %19, %21 : vector<256x64xf32>
    %c0_17 = arith.constant 0 : index
    %c0_18 = arith.constant 0 : index
    %23 = vector.load %arg8[%c0_17, %c0_18] : memref<256x64xf32, #tpu.memory_space<vmem>>, vector<256x64xf32>
    tpu.vector_store %arg8[%c0_17, %c0_18], %22 {strides = array<i32>} : memref<256x64xf32, #tpu.memory_space<vmem>>, vector<256x64xf32>,
    return
  }
  func.func @transform_0(%arg0: i32) -> (i32, i32) {
    %c0_i32 = arith.constant 0 : i32
    %c0_i32_0 = arith.constant 0 : i32
    return %arg0, %c0_i32 : i32, i32
  }
  func.func @transform_1(%arg0: i32) -> (i32, i32) {
    %c0_i32 = arith.constant 0 : i32
    %c0_i32_0 = arith.constant 0 : i32
    %c0_i32_1 = arith.constant 0 : i32
    return %c0_i32, %c0_i32_0 : i32, i32
  }
  func.func @transform_2(%arg0: i32) -> (i32, i32) {
    %c0_i32 = arith.constant 0 : i32
    %c0_i32_0 = arith.constant 0 : i32
    %c0_i32_1 = arith.constant 0 : i32
    return %c0_i32, %c0_i32_0 : i32, i32
  }
  func.func @transform_3(%arg0: i32) -> (i32, i32) {
    %c0_i32 = arith.constant 0 : i32
    %c0_i32_0 = arith.constant 0 : i32
    %c0_i32_1 = arith.constant 0 : i32
    return %c0_i32, %c0_i32_0 : i32, i32
  }
  func.func @transform_4(%arg0: i32) -> (i32, i32) {
    %c0_i32 = arith.constant 0 : i32
    %c0_i32_0 = arith.constant 0 : i32
    %c0_i32_1 = arith.constant 0 : i32
    return %c0_i32, %c0_i32_0 : i32, i32
  }
  func.func @transform_5(%arg0: i32) -> (i32, i32) {
    %c0_i32 = arith.constant 0 : i32
    %c0_i32_0 = arith.constant 0 : i32
    %c0_i32_1 = arith.constant 0 : i32
    return %c0_i32, %c0_i32_0 : i32, i32
  }
  func.func @transform_6(%arg0: i32) -> (i32, i32) {
    %c0_i32 = arith.constant 0 : i32
    %c0_i32_0 = arith.constant 0 : i32
    %c0_i32_1 = arith.constant 0 : i32
    return %c0_i32, %c0_i32_0 : i32, i32
  }
  func.func @transform_7(%arg0: i32) -> (i32, i32) {
    %c0_i32 = arith.constant 0 : i32
    %c0_i32_0 = arith.constant 0 : i32
    return %arg0, %c0_i32 : i32, i32
  }
}

</mosaic_0001>

<llo_original>
// kernel: autoencoder_forward.1
$region0: #{autoencoder_forward.1}
  #allocation0 [shape = 'u32[]', space=smem, size = 0x4, offset = 0x4, fixed_abs, tag = 'smem constant byte address 0x4 - core index']
  #allocation1 [shape = 'u32[144,128]{1,0:T(1,128)}', space=vmem, size = 0x12000, scoped, tag = 'internal scratch']
  %s0 = inlined_call_operand.vmem [shape: f32[512,64], index: 0, kind: input, shape index: {}]
  %s1 = inlined_call_operand.vmem [shape: bf16[64,256], index: 1, kind: input, shape index: {}]
  %s2 = inlined_call_operand.vmem [shape: f32[1,256], index: 2, kind: input, shape index: {}]
  %s3 = inlined_call_operand.vmem [shape: bf16[256,128], index: 3, kind: input, shape index: {}]
  %s4 = inlined_call_operand.vmem [shape: f32[1,128], index: 4, kind: input, shape index: {}]
  %s5 = inlined_call_operand.vmem [shape: bf16[128,64], index: 5, kind: input, shape index: {}]
  %s6 = inlined_call_operand.vmem [shape: f32[1,64], index: 6, kind: input, shape index: {}]
  %s7 = inlined_call_operand.vmem [shape: f32[512,64], index: 7, kind: output, shape index: {}]
  %s8 = sld [smem:[#allocation0]]
  $region61: #{autoencoder_forward.1} parent=0
    _
  %s10 = ssub.s32 1, %s8
  %s11 = scalar_select 0, %s10, %s8
  loop: start=0, step=1, limit=4
  $region2: #{autoencoder_forward.1} parent=0 // loop_pre_header
    _
  $region3: #{autoencoder_forward.1} parent=0 // loop_header
    %s13 = sphi 0, %s17
    %p14 = scmp.ge.s32.totalorder %s13, 4
    %s23 = sphi 0, %s25
    %s26 = sphi 0, %s23
    %s27 = sphi 0, %s26
    %s43 = sphi 0, %s27
    %s47 = sphi 0, %s47
    %s49 = sphi 0, %s47
    %s50 = sphi 0, %s49
    %s64 = sphi 0, %s50
    %s68 = sphi 0, %s68
    %s70 = sphi 0, %s68
    %s71 = sphi 0, %s70
    %s85 = sphi 0, %s71
    %s89 = sphi 0, %s89
    %s91 = sphi 0, %s89
    %s92 = sphi 0, %s91
    %s106 = sphi 0, %s92
    %s110 = sphi 0, %s110
    %s112 = sphi 0, %s110
    %s113 = sphi 0, %s112
    %s127 = sphi 0, %s113
    %s131 = sphi 0, %s131
    %s133 = sphi 0, %s131
    %s134 = sphi 0, %s133
    %s148 = sphi 0, %s134
    %s152 = sphi 0, %s152
    %s154 = sphi 0, %s152
    %s155 = sphi 0, %s154
    %s169 = sphi 0, %s155
    %s175 = sphi 0, %s177
    %s178 = sphi 0, %s175
    %s179 = sphi 0, %s178
    %s195 = sphi 0, %s179
  $region4: #{autoencoder_forward.1} parent=0 // loop_header_branch
    %16 = sbr.rel (%p14) target = $region8
  $region5: #{autoencoder_forward.1} parent=0 // loop_body
    %s18 = ssub.s32 %s13, 1
    %s19 = ssub.s32 %s13, 2
    %s20 = sadd.s32 %s13, 1
    %s21 = ssub.s32 %s13, %s20
    %p22 = scmp.eq.s32.totalorder %s21, 0
    %s24 = sadd.s32 %s23, 1
    %s25 = scalar_select %p22, %s23, %s24
    %p28 = pneg %p22
    %p29 = scmp.eq.s32.totalorder %s13, 1
    %p30 = por %p28, %p29
    %p31 = scmp.ne.s32.totalorder %s23, %s26
    %p32 = scmp.eq.s32.totalorder %s13, 0
    %p33 = por %p31, %p32
    %p34 = scmp.ne.s32.totalorder %s23, %s26
    %p35 = scmp.eq.s32.totalorder %s18, 1
    %p36 = por %p34, %p35
    %p37 = scmp.ne.s32.totalorder %s26, %s27
    %p38 = scmp.eq.s32.totalorder %s18, 0
    %p39 = por %p37, %p38
    %p40 = scmp.ne.s32.totalorder %s26, %s27
    %p41 = scmp.eq.s32.totalorder %s19, 1
    %p42 = por %p40, %p41
    %p44 = scmp.ne.s32.totalorder %s27, %s43
    %p45 = scmp.eq.s32.totalorder %s19, 0
    %p46 = por %p44, %p45
    %s48 = sadd.s32 %s47, 1
    %p51 = scmp.eq.s32.totalorder %s13, 1
    %p52 = scmp.ne.s32.totalorder %s47, %s49
    %p53 = scmp.eq.s32.totalorder %s13, 0
    %p54 = por %p52, %p53
    %p55 = scmp.ne.s32.totalorder %s47, %s49
    %p56 = scmp.eq.s32.totalorder %s18, 1
    %p57 = por %p55, %p56
    %p58 = scmp.ne.s32.totalorder %s49, %s50
    %p59 = scmp.eq.s32.totalorder %s18, 0
    %p60 = por %p58, %p59
    %p61 = scmp.ne.s32.totalorder %s49, %s50
    %p62 = scmp.eq.s32.totalorder %s19, 1
    %p63 = por %p61, %p62
    %p65 = scmp.ne.s32.totalorder %s50, %s64
    %p66 = scmp.eq.s32.totalorder %s19, 0
    %p67 = por %p65, %p66
    %s69 = sadd.s32 %s68, 1
    %p72 = scmp.eq.s32.totalorder %s13, 1
    %p73 = scmp.ne.s32.totalorder %s68, %s70
    %p74 = scmp.eq.s32.totalorder %s13, 0
    %p75 = por %p73, %p74
    %p76 = scmp.ne.s32.totalorder %s68, %s70
    %p77 = scmp.eq.s32.totalorder %s18, 1
    %p78 = por %p76, %p77
    %p79 = scmp.ne.s32.totalorder %s70, %s71
    %p80 = scmp.eq.s32.totalorder %s18, 0
    %p81 = por %p79, %p80
    %p82 = scmp.ne.s32.totalorder %s70, %s71
    %p83 = scmp.eq.s32.totalorder %s19, 1
    %p84 = por %p82, %p83
    %p86 = scmp.ne.s32.totalorder %s71, %s85
    %p87 = scmp.eq.s32.totalorder %s19, 0
    %p88 = por %p86, %p87
    %s90 = sadd.s32 %s89, 1
    %p93 = scmp.eq.s32.totalorder %s13, 1
    %p94 = scmp.ne.s32.totalorder %s89, %s91
    %p95 = scmp.eq.s32.totalorder %s13, 0
    %p96 = por %p94, %p95
    %p97 = scmp.ne.s32.totalorder %s89, %s91
    %p98 = scmp.eq.s32.totalorder %s18, 1
    %p99 = por %p97, %p98
    %p100 = scmp.ne.s32.totalorder %s91, %s92
    %p101 = scmp.eq.s32.totalorder %s18, 0
    %p102 = por %p100, %p101
    %p103 = scmp.ne.s32.totalorder %s91, %s92
    %p104 = scmp.eq.s32.totalorder %s19, 1
    %p105 = por %p103, %p104
    %p107 = scmp.ne.s32.totalorder %s92, %s106
    %p108 = scmp.eq.s32.totalorder %s19, 0
    %p109 = por %p107, %p108
    %s111 = sadd.s32 %s110, 1
    %p114 = scmp.eq.s32.totalorder %s13, 1
    %p115 = scmp.ne.s32.totalorder %s110, %s112
    %p116 = scmp.eq.s32.totalorder %s13, 0
    %p117 = por %p115, %p116
    %p118 = scmp.ne.s32.totalorder %s110, %s112
    %p119 = scmp.eq.s32.totalorder %s18, 1
    %p120 = por %p118, %p119
    %p121 = scmp.ne.s32.totalorder %s112, %s113
    %p122 = scmp.eq.s32.totalorder %s18, 0
    %p123 = por %p121, %p122
    %p124 = scmp.ne.s32.totalorder %s112, %s113
    %p125 = scmp.eq.s32.totalorder %s19, 1
    %p126 = por %p124, %p125
    %p128 = scmp.ne.s32.totalorder %s113, %s127
    %p129 = scmp.eq.s32.totalorder %s19, 0
    %p130 = por %p128, %p129
    %s132 = sadd.s32 %s131, 1
    %p135 = scmp.eq.s32.totalorder %s13, 1
    %p136 = scmp.ne.s32.totalorder %s131, %s133
    %p137 = scmp.eq.s32.totalorder %s13, 0
    %p138 = por %p136, %p137
    %p139 = scmp.ne.s32.totalorder %s131, %s133
    %p140 = scmp.eq.s32.totalorder %s18, 1
    %p141 = por %p139, %p140
    %p142 = scmp.ne.s32.totalorder %s133, %s134
    %p143 = scmp.eq.s32.totalorder %s18, 0
    %p144 = por %p142, %p143
    %p145 = scmp.ne.s32.totalorder %s133, %s134
    %p146 = scmp.eq.s32.totalorder %s19, 1
    %p147 = por %p145, %p146
    %p149 = scmp.ne.s32.totalorder %s134, %s148
    %p150 = scmp.eq.s32.totalorder %s19, 0
    %p151 = por %p149, %p150
    %s153 = sadd.s32 %s152, 1
    %p156 = scmp.eq.s32.totalorder %s13, 1
    %p157 = scmp.ne.s32.totalorder %s152, %s154
    %p158 = scmp.eq.s32.totalorder %s13, 0
    %p159 = por %p157, %p158
    %p160 = scmp.ne.s32.totalorder %s152, %s154
    %p161 = scmp.eq.s32.totalorder %s18, 1
    %p162 = por %p160, %p161
    %p163 = scmp.ne.s32.totalorder %s154, %s155
    %p164 = scmp.eq.s32.totalorder %s18, 0
    %p165 = por %p163, %p164
    %p166 = scmp.ne.s32.totalorder %s154, %s155
    %p167 = scmp.eq.s32.totalorder %s19, 1
    %p168 = por %p166, %p167
    %p170 = scmp.ne.s32.totalorder %s155, %s169
    %p171 = scmp.eq.s32.totalorder %s19, 0
    %p172 = por %p170, %p171
    %s173 = ssub.s32 %s13, %s20
    %p174 = scmp.eq.s32.totalorder %s173, 0
    %s176 = sadd.s32 %s175, 1
    %s177 = scalar_select %p174, %s175, %s176
    %p180 = pneg %p174
    %p181 = scmp.eq.s32.totalorder %s13, 1
    %p182 = por %p180, %p181
    %p183 = scmp.ne.s32.totalorder %s175, %s178
    %p184 = scmp.eq.s32.totalorder %s13, 0
    %p185 = por %p183, %p184
    %p186 = scmp.ne.s32.totalorder %s175, %s178
    %p187 = scmp.eq.s32.totalorder %s18, 1
    %p188 = por %p186, %p187
    %p189 = scmp.ne.s32.totalorder %s178, %s179
    %p190 = scmp.eq.s32.totalorder %s18, 0
    %p191 = por %p189, %p190
    %p192 = scmp.ne.s32.totalorder %s178, %s179
    %p193 = scmp.eq.s32.totalorder %s19, 1
    %p194 = por %p192, %p193
    %p196 = scmp.ne.s32.totalorder %s179, %s195
    %p197 = scmp.eq.s32.totalorder %s19, 0
    %p198 = por %p196, %p197
    %p199 = scmp.le.s32.totalorder 1, %s13
    %p200 = scmp.lt.s32.totalorder %s13, 3
    %p201 = pnand %p199, %p200
    %p202 = pneg %p201
    // Predicated region
    $region9: #{autoencoder_forward.1} parent=5 // pred_check
      _
    $region10: #{autoencoder_forward.1} parent=5 // pred_check_branch
      %204 = sbr.rel (%p201) target = $region12
    $region11: #{autoencoder_forward.1} parent=5 // pred_region
      %s205 = ssub.s32 %s13, 1
      // Predicated region
      $region13: #{autoencoder_forward.1} parent=11 // pred_check
        %p206 = pneg %p60
      $region14: #{autoencoder_forward.1} parent=11 // pred_check_branch
        %208 = sbr.rel (%p206) target = $region16
      $region15: #{autoencoder_forward.1} parent=11 // pred_region
        _
      $region16: #{autoencoder_forward.1} parent=11 // pred_fallthru
        _
      // Predicated region
      $region17: #{autoencoder_forward.1} parent=11 // pred_check
        %p209 = pneg %p81
      $region18: #{autoencoder_forward.1} parent=11 // pred_check_branch
        %211 = sbr.rel (%p209) target = $region20
      $region19: #{autoencoder_forward.1} parent=11 // pred_region
        _
      $region20: #{autoencoder_forward.1} parent=11 // pred_fallthru
        _
      // Predicated region
      $region21: #{autoencoder_forward.1} parent=11 // pred_check
        %p212 = pneg %p102
      $region22: #{autoencoder_forward.1} parent=11 // pred_check_branch
        %214 = sbr.rel (%p212) target = $region24
      $region23: #{autoencoder_forward.1} parent=11 // pred_region
        _
      $region24: #{autoencoder_forward.1} parent=11 // pred_fallthru
        _
      // Predicated region
      $region25: #{autoencoder_forward.1} parent=11 // pred_check
        %p215 = pneg %p123
      $region26: #{autoencoder_forward.1} parent=11 // pred_check_branch
        %217 = sbr.rel (%p215) target = $region28
      $region27: #{autoencoder_forward.1} parent=11 // pred_region
        _
      $region28: #{autoencoder_forward.1} parent=11 // pred_fallthru
        _
      // Predicated region
      $region29: #{autoencoder_forward.1} parent=11 // pred_check
        %p218 = pneg %p144
      $region30: #{autoencoder_forward.1} parent=11 // pred_check_branch
        %220 = sbr.rel (%p218) target = $region32
      $region31: #{autoencoder_forward.1} parent=11 // pred_region
        _
      $region32: #{autoencoder_forward.1} parent=11 // pred_fallthru
        _
      // Predicated region
      $region33: #{autoencoder_forward.1} parent=11 // pred_check
        %p221 = pneg %p165
      $region34: #{autoencoder_forward.1} parent=11 // pred_check_branch
        %223 = sbr.rel (%p221) target = $region36
      $region35: #{autoencoder_forward.1} parent=11 // pred_region
        _
      $region36: #{autoencoder_forward.1} parent=11 // pred_fallthru
        _
    $region12: #{autoencoder_forward.1} parent=5 // pred_fallthru
      _
    %p224 = scmp.lt.s32.totalorder %s13, 2
    // Predicated region
    $region37: #{autoencoder_forward.1} parent=5 // pred_check
      %p225 = pneg %p224
    $region38: #{autoencoder_forward.1} parent=5 // pred_check_branch
      %227 = sbr.rel (%p225) target = $region40
    $region39: #{autoencoder_forward.1} parent=5 // pred_region
      // Predicated region
      $region41: #{autoencoder_forward.1} parent=39 // pred_check
        %p228 = pneg %p33
      $region42: #{autoencoder_forward.1} parent=39 // pred_check_branch
        %230 = sbr.rel (%p228) target = $region44
      $region43: #{autoencoder_forward.1} parent=39 // pred_region
        %s231 = smul.u32 32, %s13
        %p232 = scmp.lt.s32.totalorder %s231, 63
        %s233 = scalar_select %p232, %s231, 63
        %s234 = smul.addr %s233, 8
        %s235 = scalar_lea.vmem %s0, %s234
        %s236 = smul.u32 32, %s13
      $region44: #{autoencoder_forward.1} parent=39 // pred_fallthru
        _
    $region40: #{autoencoder_forward.1} parent=5 // pred_fallthru
      _
    %p237 = scmp.le.s32.totalorder 1, %s13
    %p238 = scmp.lt.s32.totalorder %s13, 3
    %p239 = pnand %p237, %p238
    %p240 = pneg %p239
    // Predicated region
    $region45: #{autoencoder_forward.1} parent=5 // pred_check
      _
    $region46: #{autoencoder_forward.1} parent=5 // pred_check_branch
      %242 = sbr.rel (%p239) target = $region48
    $region47: #{autoencoder_forward.1} parent=5 // pred_region
      %s243 = ssub.s32 %s13, 1
      %s244 = smul.u32 32, %s18
      %p245 = scmp.lt.s32.totalorder %s244, 63
      %s246 = scalar_select %p245, %s244, 63
      %s247 = smul.addr %s246, 8
      %s248 = scalar_lea.vmem %s0, %s247
      %p249 = pneg %p39
      %p250 = pneg %p36
      %p251 = pneg %p60
      %p252 = pneg %p57
      %p253 = pneg %p81
      %p254 = pneg %p78
      %p255 = pneg %p102
      %p256 = pneg %p99
      %p257 = pneg %p123
      %p258 = pneg %p120
      %p259 = pneg %p144
      %p260 = pneg %p141
      %p261 = pneg %p165
      %p262 = pneg %p162
      %p263 = pneg %p191
      %p264 = pneg %p188
      %s265 = smul.u32 32, %s18
      %p266 = scmp.lt.s32.totalorder %s265, 63
      %s267 = scalar_select %p266, %s265, 63
      %s268 = smul.addr %s267, 8
      %s269 = scalar_lea.vmem %s7, %s268
      %s270 = smul.u32 32, %s18
      %p271 = scmp.lt.s32.totalorder %s270, 63
      %s272 = scalar_select %p271, %s270, 63
      %s273 = smul.addr %s272, 8
      %s274 = scalar_lea.vmem %s0, %s273
      %s275 = smul.u32 32, %s18
      %s276 = smul.u32 32, %s18
      %p277 = scmp.lt.s32.totalorder %s276, 63
      %s278 = scalar_select %p277, %s276, 63
      %s279 = smul.addr %s278, 8
      %s280 = scalar_lea.vmem %s7, %s279
      %s281 = smul.u32 32, %s18
      %v283 = vld [vmem:[%s274] sm:$0xff]
      %v284 = vld [vmem:[%s274 + $0x8] sm:$0xff]
      %v285 = vld [vmem:[%s274 + $0x10] sm:$0xff]
      %v286 = vld [vmem:[%s274 + $0x18] sm:$0xff]
      %v287 = vld [vmem:[%s274 + $0x20] sm:$0xff]
      %v288 = vld [vmem:[%s274 + $0x28] sm:$0xff]
      %v289 = vld [vmem:[%s274 + $0x30] sm:$0xff]
      %v290 = vld [vmem:[%s274 + $0x38] sm:$0xff]
      %v291 = vld [vmem:[%s274 + $0x40] sm:$0xff]
      %v292 = vld [vmem:[%s274 + $0x48] sm:$0xff]
      %v293 = vld [vmem:[%s274 + $0x50] sm:$0xff]
      %v294 = vld [vmem:[%s274 + $0x58] sm:$0xff]
      %v295 = vld [vmem:[%s274 + $0x60] sm:$0xff]
      %v296 = vld [vmem:[%s274 + $0x68] sm:$0xff]
      %v297 = vld [vmem:[%s274 + $0x70] sm:$0xff]
      %v298 = vld [vmem:[%s274 + $0x78] sm:$0xff]
      %v299 = vld [vmem:[%s274 + $0x80] sm:$0xff]
      %v300 = vld [vmem:[%s274 + $0x88] sm:$0xff]
      %v301 = vld [vmem:[%s274 + $0x90] sm:$0xff]
      %v302 = vld [vmem:[%s274 + $0x98] sm:$0xff]
      %v303 = vld [vmem:[%s274 + $0xa0] sm:$0xff]
      %v304 = vld [vmem:[%s274 + $0xa8] sm:$0xff]
      %v305 = vld [vmem:[%s274 + $0xb0] sm:$0xff]
      %v306 = vld [vmem:[%s274 + $0xb8] sm:$0xff]
      %v307 = vld [vmem:[%s274 + $0xc0] sm:$0xff]
      %v308 = vld [vmem:[%s274 + $0xc8] sm:$0xff]
      %v309 = vld [vmem:[%s274 + $0xd0] sm:$0xff]
      %v310 = vld [vmem:[%s274 + $0xd8] sm:$0xff]
      %v311 = vld [vmem:[%s274 + $0xe0] sm:$0xff]
      %v312 = vld [vmem:[%s274 + $0xe8] sm:$0xff]
      %v313 = vld [vmem:[%s274 + $0xf0] sm:$0xff]
      %v314 = vld [vmem:[%s274 + $0xf8] sm:$0xff]
      %v315 = vpack.c.bf16 %v284, %v283
      %v316 = vpack.c.bf16 %v286, %v285
      %v317 = vpack.c.bf16 %v288, %v287
      %v318 = vpack.c.bf16 %v290, %v289
      %v319 = vpack.c.bf16 %v292, %v291
      %v320 = vpack.c.bf16 %v294, %v293
      %v321 = vpack.c.bf16 %v296, %v295
      %v322 = vpack.c.bf16 %v298, %v297
      %v323 = vpack.c.bf16 %v300, %v299
      %v324 = vpack.c.bf16 %v302, %v301
      %v325 = vpack.c.bf16 %v304, %v303
      %v326 = vpack.c.bf16 %v306, %v305
      %v327 = vpack.c.bf16 %v308, %v307
      %v328 = vpack.c.bf16 %v310, %v309
      %v329 = vpack.c.bf16 %v312, %v311
      %v330 = vpack.c.bf16 %v314, %v313
      %v331 = vld [vmem:[%s1] sm:$0xff]
      %v332 = vld [vmem:[%s1 + $0x8] sm:$0xff]
      %v333 = vld [vmem:[%s1 + $0x10] sm:$0xff]
      %v334 = vld [vmem:[%s1 + $0x18] sm:$0xff]
      %v335 = vld [vmem:[%s1 + $0x20] sm:$0xff]
      %v336 = vld [vmem:[%s1 + $0x28] sm:$0xff]
      %v337 = vld [vmem:[%s1 + $0x30] sm:$0xff]
      %v338 = vld [vmem:[%s1 + $0x38] sm:$0xff]
      %v339 = vld [vmem:[%s2] sm:$0x3]
      %v341 = vlaneseq
      %v342 = vshrl.u32 %v341, 7
      %v343 = vsub.s32 0, %v342
      %v344 = vrot.slane %v339, %v343
      %v345 = vlaneseq
      %v346 = vshrl.u32 %v345, 7
      %v347 = vsub.s32 1, %v346
      %v348 = vrot.slane %v339, %v347
      %v359 = vunpack.c.l.b16 %v331
      %v360 = vunpack.c.h.b16 %v331
      %v361 = vunpack.c.l.b16 %v332
      %v362 = vunpack.c.h.b16 %v332
      %v363 = vunpack.c.l.b16 %v333
      %v364 = vunpack.c.h.b16 %v333
      %v365 = vunpack.c.l.b16 %v334
      %v366 = vunpack.c.h.b16 %v334
      %v367 = vunpack.c.l.b16 %v335
      %v368 = vunpack.c.h.b16 %v335
      %v369 = vunpack.c.l.b16 %v336
      %v370 = vunpack.c.h.b16 %v336
      %v371 = vunpack.c.l.b16 %v337
      %v372 = vunpack.c.h.b16 %v337
      %v373 = vunpack.c.l.b16 %v338
      %v374 = vunpack.c.h.b16 %v338
      %v375 = vpack.c.b16 %v361, %v359
      %v376 = vpack.c.b16 %v362, %v360
      %v377 = vpack.c.b16 %v365, %v363
      %v378 = vpack.c.b16 %v366, %v364
      %v379 = vpack.c.b16 %v369, %v367
      %v380 = vpack.c.b16 %v370, %v368
      %v381 = vpack.c.b16 %v373, %v371
      %v382 = vpack.c.b16 %v374, %v372
      %vm391 = vcmask 523264
      %v393 = vsel %vm391, %v315, 0
      %v396 = vsel %vm391, %v316, 0
      %v399 = vsel %vm391, %v317, 0
      %v402 = vsel %vm391, %v318, 0
      %v405 = vsel %vm391, %v319, 0
      %v408 = vsel %vm391, %v320, 0
      %v411 = vsel %vm391, %v321, 0
      %v414 = vsel %vm391, %v322, 0
      %v417 = vsel %vm391, %v323, 0
      %v420 = vsel %vm391, %v324, 0
      %v423 = vsel %vm391, %v325, 0
      %v426 = vsel %vm391, %v326, 0
      %v429 = vsel %vm391, %v327, 0
      %v432 = vsel %vm391, %v328, 0
      %v435 = vsel %vm391, %v329, 0
      %v438 = vsel %vm391, %v330, 0
      %440 = vmatprep.subr.bf16.mxu0 %v376
      %441 = vmatpush1.bf16.msra.mxu0 %v375
      %442 = vmatprep.subr.bf16.mxu0 %v378
      %443 = vmatpush1.bf16.msra.mxu0 %v377
      %444 = vmatprep.subr.bf16.mxu0 %v380
      %445 = vmatpush1.bf16.msra.mxu0 %v379
      %446 = vmatprep.subr.bf16.mxu0 %v382
      %447 = vmatpush1.bf16.msra.mxu0 %v381
      %448 = vmatprep.subr.bf16.mxu0 0
      %449 = vmatpush1.bf16.msra.mxu0 0
      %450 = vmatprep.subr.bf16.mxu0 0
      %451 = vmatpush1.bf16.msra.mxu0 0
      %452 = vmatprep.subr.bf16.mxu0 0
      %453 = vmatpush1.bf16.msra.mxu0 0
      %454 = vmatprep.subr.bf16.mxu0 0
      %455 = vmatpush1.bf16.msra.mxu0 0
      %456 = vmatprep.subr.bf16.mxu0 0
      %457 = vmatpush1.bf16.msra.mxu0 0
      %458 = vmatprep.subr.bf16.mxu0 0
      %459 = vmatpush1.bf16.msra.mxu0 0
      %460 = vmatprep.subr.bf16.mxu0 0
      %461 = vmatpush1.bf16.msra.mxu0 0
      %462 = vmatprep.subr.bf16.mxu0 0
      %463 = vmatpush1.bf16.msra.mxu0 0
      %464 = vmatprep.subr.bf16.mxu0 0
      %465 = vmatpush1.bf16.msra.mxu0 0
      %466 = vmatprep.subr.bf16.mxu0 0
      %467 = vmatpush1.bf16.msra.mxu0 0
      %468 = vmatprep.subr.bf16.mxu0 0
      %469 = vmatpush1.bf16.msra.mxu0 0
      %470 = vmatprep.subr.bf16.mxu0 0
      %471 = vmatpush1.bf16.msra.mxu0 0
      %472 = vmatprep.mubr.bf16.mxu0 0
      %473 = vmatmul.mubr.bf16.gmra.mrb[0].mxu0 %v393
      %v474 = vpop.f32.mrb[0].mxu0
      %v475 = vadd.f32 %v344, %v474
      %v476 = vpop.f32.mrb[0].mxu0
      %v477 = vadd.f32 %v348, %v476
      %v478 = vpop.f32.mrb[0].mxu0
      %v479 = vadd.f32 %v344, %v478
      %v480 = vpop.f32.mrb[0].mxu0
      %v481 = vadd.f32 %v348, %v480
      %482 = vmatprep.mubr.bf16.mxu0 0
      %483 = vmatmul.mubr.bf16.gmra.mrb[0].mxu0 %v396
      %v484 = vpop.f32.mrb[0].mxu0
      %v485 = vadd.f32 %v344, %v484
      %v486 = vpop.f32.mrb[0].mxu0
      %v487 = vadd.f32 %v348, %v486
      %v488 = vpop.f32.mrb[0].mxu0
      %v489 = vadd.f32 %v344, %v488
      %v490 = vpop.f32.mrb[0].mxu0
      %v491 = vadd.f32 %v348, %v490
      %492 = vmatprep.mubr.bf16.mxu0 0
      %493 = vmatmul.mubr.bf16.gmra.mrb[0].mxu0 %v399
      %v494 = vpop.f32.mrb[0].mxu0
      %v495 = vadd.f32 %v344, %v494
      %v496 = vpop.f32.mrb[0].mxu0
      %v497 = vadd.f32 %v348, %v496
      %v498 = vpop.f32.mrb[0].mxu0
      %v499 = vadd.f32 %v344, %v498
      %v500 = vpop.f32.mrb[0].mxu0
      %v501 = vadd.f32 %v348, %v500
      %502 = vmatprep.mubr.bf16.mxu0 0
      %503 = vmatmul.mubr.bf16.gmra.mrb[0].mxu0 %v402
      %v504 = vpop.f32.mrb[0].mxu0
      %v505 = vadd.f32 %v344, %v504
      %v506 = vpop.f32.mrb[0].mxu0
      %v507 = vadd.f32 %v348, %v506
      %v508 = vpop.f32.mrb[0].mxu0
      %v509 = vadd.f32 %v344, %v508
      %v510 = vpop.f32.mrb[0].mxu0
      %v511 = vadd.f32 %v348, %v510
      %512 = vmatprep.mubr.bf16.mxu0 0
      %513 = vmatmul.mubr.bf16.gmra.mrb[0].mxu0 %v405
      %v514 = vpop.f32.mrb[0].mxu0
      %v515 = vadd.f32 %v344, %v514
      %v516 = vpop.f32.mrb[0].mxu0
      %v517 = vadd.f32 %v348, %v516
      %v518 = vpop.f32.mrb[0].mxu0
      %v519 = vadd.f32 %v344, %v518
      %v520 = vpop.f32.mrb[0].mxu0
      %v521 = vadd.f32 %v348, %v520
      %522 = vmatprep.mubr.bf16.mxu0 0
      %523 = vmatmul.mubr.bf16.gmra.mrb[0].mxu0 %v408
      %v524 = vpop.f32.mrb[0].mxu0
      %v525 = vadd.f32 %v344, %v524
      %v526 = vpop.f32.mrb[0].mxu0
      %v527 = vadd.f32 %v348, %v526
      %v528 = vpop.f32.mrb[0].mxu0
      %v529 = vadd.f32 %v344, %v528
      %v530 = vpop.f32.mrb[0].mxu0
      %v531 = vadd.f32 %v348, %v530
      %532 = vmatprep.mubr.bf16.mxu0 0
      %533 = vmatmul.mubr.bf16.gmra.mrb[0].mxu0 %v411
      %v534 = vpop.f32.mrb[0].mxu0
      %v535 = vadd.f32 %v344, %v534
      %v536 = vpop.f32.mrb[0].mxu0
      %v537 = vadd.f32 %v348, %v536
      %v538 = vpop.f32.mrb[0].mxu0
      %v539 = vadd.f32 %v344, %v538
      %v540 = vpop.f32.mrb[0].mxu0
      %v541 = vadd.f32 %v348, %v540
      %542 = vmatprep.mubr.bf16.mxu0 0
      %543 = vmatmul.mubr.bf16.gmra.mrb[0].mxu0 %v414
      %v544 = vpop.f32.mrb[0].mxu0
      %v545 = vadd.f32 %v344, %v544
      %v546 = vpop.f32.mrb[0].mxu0
      %v547 = vadd.f32 %v348, %v546
      %v548 = vpop.f32.mrb[0].mxu0
      %v549 = vadd.f32 %v344, %v548
      %v550 = vpop.f32.mrb[0].mxu0
      %v551 = vadd.f32 %v348, %v550
      %552 = vmatprep.mubr.bf16.mxu0 0
      %553 = vmatmul.mubr.bf16.gmra.mrb[0].mxu0 %v417
      %v554 = vpop.f32.mrb[0].mxu0
      %v555 = vadd.f32 %v344, %v554
      %v556 = vpop.f32.mrb[0].mxu0
      %v557 = vadd.f32 %v348, %v556
      %v558 = vpop.f32.mrb[0].mxu0
      %v559 = vadd.f32 %v344, %v558
      %v560 = vpop.f32.mrb[0].mxu0
      %v561 = vadd.f32 %v348, %v560
      %562 = vmatprep.mubr.bf16.mxu0 0
      %563 = vmatmul.mubr.bf16.gmra.mrb[0].mxu0 %v420
      %v564 = vpop.f32.mrb[0].mxu0
      %v565 = vadd.f32 %v344, %v564
      %v566 = vpop.f32.mrb[0].mxu0
      %v567 = vadd.f32 %v348, %v566
      %v568 = vpop.f32.mrb[0].mxu0
      %v569 = vadd.f32 %v344, %v568
      %v570 = vpop.f32.mrb[0].mxu0
      %v571 = vadd.f32 %v348, %v570
      %572 = vmatprep.mubr.bf16.mxu0 0
      %573 = vmatmul.mubr.bf16.gmra.mrb[0].mxu0 %v423
      %v574 = vpop.f32.mrb[0].mxu0
      %v575 = vadd.f32 %v344, %v574
      %v576 = vpop.f32.mrb[0].mxu0
      %v577 = vadd.f32 %v348, %v576
      %v578 = vpop.f32.mrb[0].mxu0
      %v579 = vadd.f32 %v344, %v578
      %v580 = vpop.f32.mrb[0].mxu0
      %v581 = vadd.f32 %v348, %v580
      %582 = vmatprep.mubr.bf16.mxu0 0
      %583 = vmatmul.mubr.bf16.gmra.mrb[0].mxu0 %v426
      %v584 = vpop.f32.mrb[0].mxu0
      %v585 = vadd.f32 %v344, %v584
      %v586 = vpop.f32.mrb[0].mxu0
      %v587 = vadd.f32 %v348, %v586
      %v588 = vpop.f32.mrb[0].mxu0
      %v589 = vadd.f32 %v344, %v588
      %v590 = vpop.f32.mrb[0].mxu0
      %v591 = vadd.f32 %v348, %v590
      %592 = vmatprep.mubr.bf16.mxu0 0
      %593 = vmatmul.mubr.bf16.gmra.mrb[0].mxu0 %v429
      %v594 = vpop.f32.mrb[0].mxu0
      %v595 = vadd.f32 %v344, %v594
      %v596 = vpop.f32.mrb[0].mxu0
      %v597 = vadd.f32 %v348, %v596
      %v598 = vpop.f32.mrb[0].mxu0
      %v599 = vadd.f32 %v344, %v598
      %v600 = vpop.f32.mrb[0].mxu0
      %v601 = vadd.f32 %v348, %v600
      %602 = vmatprep.mubr.bf16.mxu0 0
      %603 = vmatmul.mubr.bf16.gmra.mrb[0].mxu0 %v432
      %v604 = vpop.f32.mrb[0].mxu0
      %v605 = vadd.f32 %v344, %v604
      %v606 = vpop.f32.mrb[0].mxu0
      %v607 = vadd.f32 %v348, %v606
      %v608 = vpop.f32.mrb[0].mxu0
      %v609 = vadd.f32 %v344, %v608
      %v610 = vpop.f32.mrb[0].mxu0
      %v611 = vadd.f32 %v348, %v610
      %612 = vmatprep.mubr.bf16.mxu0 0
      %613 = vmatmul.mubr.bf16.gmra.mrb[0].mxu0 %v435
      %v614 = vpop.f32.mrb[0].mxu0
      %v615 = vadd.f32 %v344, %v614
      %v616 = vpop.f32.mrb[0].mxu0
      %v617 = vadd.f32 %v348, %v616
      %v618 = vpop.f32.mrb[0].mxu0
      %v619 = vadd.f32 %v344, %v618
      %v620 = vpop.f32.mrb[0].mxu0
      %v621 = vadd.f32 %v348, %v620
      %622 = vmatprep.mubr.bf16.mxu0 0
      %623 = vmatmul.mubr.bf16.gmra.mrb[0].mxu0 %v438
      %v624 = vpop.f32.mrb[0].mxu0
      %v625 = vadd.f32 %v344, %v624
      %v626 = vpop.f32.mrb[0].mxu0
      %v627 = vadd.f32 %v348, %v626
      %v628 = vpop.f32.mrb[0].mxu0
      %v629 = vadd.f32 %v344, %v628
      %v630 = vpop.f32.mrb[0].mxu0
      %v631 = vadd.f32 %v348, %v630
      %632 = vdwg.mxu0
      %v633 = vmax.f32 %v475, 0.0
      %v634 = vmax.f32 %v477, 0.0
      %v635 = vmax.f32 %v479, 0.0
      %v636 = vmax.f32 %v481, 0.0
      %v637 = vmax.f32 %v485, 0.0
      %v638 = vmax.f32 %v487, 0.0
      %v639 = vmax.f32 %v489, 0.0
      %v640 = vmax.f32 %v491, 0.0
      %v641 = vmax.f32 %v495, 0.0
      %v642 = vmax.f32 %v497, 0.0
      %v643 = vmax.f32 %v499, 0.0
      %v644 = vmax.f32 %v501, 0.0
      %v645 = vmax.f32 %v505, 0.0
      %v646 = vmax.f32 %v507, 0.0
      %v647 = vmax.f32 %v509, 0.0
      %v648 = vmax.f32 %v511, 0.0
      %v649 = vmax.f32 %v515, 0.0
      %v650 = vmax.f32 %v517, 0.0
      %v651 = vmax.f32 %v519, 0.0
      %v652 = vmax.f32 %v521, 0.0
      %v653 = vmax.f32 %v525, 0.0
      %v654 = vmax.f32 %v527, 0.0
      %v655 = vmax.f32 %v529, 0.0
      %v656 = vmax.f32 %v531, 0.0
      %v657 = vmax.f32 %v535, 0.0
      %v658 = vmax.f32 %v537, 0.0
      %v659 = vmax.f32 %v539, 0.0
      %v660 = vmax.f32 %v541, 0.0
      %v661 = vmax.f32 %v545, 0.0
      %v662 = vmax.f32 %v547, 0.0
      %v663 = vmax.f32 %v549, 0.0
      %v664 = vmax.f32 %v551, 0.0
      %v665 = vmax.f32 %v555, 0.0
      %v666 = vmax.f32 %v557, 0.0
      %v667 = vmax.f32 %v559, 0.0
      %v668 = vmax.f32 %v561, 0.0
      %v669 = vmax.f32 %v565, 0.0
      %v670 = vmax.f32 %v567, 0.0
      %v671 = vmax.f32 %v569, 0.0
      %v672 = vmax.f32 %v571, 0.0
      %v673 = vmax.f32 %v575, 0.0
      %v674 = vmax.f32 %v577, 0.0
      %v675 = vmax.f32 %v579, 0.0
      %v676 = vmax.f32 %v581, 0.0
      %v677 = vmax.f32 %v585, 0.0
      %v678 = vmax.f32 %v587, 0.0
      %v679 = vmax.f32 %v589, 0.0
      %v680 = vmax.f32 %v591, 0.0
      %v681 = vmax.f32 %v595, 0.0
      %v682 = vmax.f32 %v597, 0.0
      %v683 = vmax.f32 %v599, 0.0
      %v684 = vmax.f32 %v601, 0.0
      %v685 = vmax.f32 %v605, 0.0
      %v686 = vmax.f32 %v607, 0.0
      %v687 = vmax.f32 %v609, 0.0
      %v688 = vmax.f32 %v611, 0.0
      %v689 = vmax.f32 %v615, 0.0
      %v690 = vmax.f32 %v617, 0.0
      %v691 = vmax.f32 %v619, 0.0
      %v692 = vmax.f32 %v621, 0.0
      %v693 = vmax.f32 %v625, 0.0
      %v694 = vmax.f32 %v627, 0.0
      %v695 = vmax.f32 %v629, 0.0
      %v696 = vmax.f32 %v631, 0.0
      %v697 = vpack.c.bf16 %v635, %v633
      %v698 = vpack.c.bf16 %v636, %v634
      %v699 = vpack.c.bf16 %v639, %v637
      %v700 = vpack.c.bf16 %v640, %v638
      %v701 = vpack.c.bf16 %v643, %v641
      %v702 = vpack.c.bf16 %v644, %v642
      %v703 = vpack.c.bf16 %v647, %v645
      %v704 = vpack.c.bf16 %v648, %v646
      %v705 = vpack.c.bf16 %v651, %v649
      %v706 = vpack.c.bf16 %v652, %v650
      %v707 = vpack.c.bf16 %v655, %v653
      %v708 = vpack.c.bf16 %v656, %v654
      %v709 = vpack.c.bf16 %v659, %v657
      %v710 = vpack.c.bf16 %v660, %v658
      %v711 = vpack.c.bf16 %v663, %v661
      %v712 = vpack.c.bf16 %v664, %v662
      %v713 = vpack.c.bf16 %v667, %v665
      %v714 = vpack.c.bf16 %v668, %v666
      %v715 = vpack.c.bf16 %v671, %v669
      %v716 = vpack.c.bf16 %v672, %v670
      %v717 = vpack.c.bf16 %v675, %v673
      %v718 = vpack.c.bf16 %v676, %v674
      %v719 = vpack.c.bf16 %v679, %v677
      %v720 = vpack.c.bf16 %v680, %v678
      %v721 = vpack.c.bf16 %v683, %v681
      %v722 = vpack.c.bf16 %v684, %v682
      %v723 = vpack.c.bf16 %v687, %v685
      %v724 = vpack.c.bf16 %v688, %v686
      %v725 = vpack.c.bf16 %v691, %v689
      %v726 = vpack.c.bf16 %v692, %v690
      %v727 = vpack.c.bf16 %v695, %v693
      %v728 = vpack.c.bf16 %v696, %v694
      %v729 = vld [vmem:[%s3] sm:$0xf]
      %v730 = vld [vmem:[%s3 + $0x4] sm:$0xf]
      %v731 = vld [vmem:[%s3 + $0x8] sm:$0xf]
      %v732 = vld [vmem:[%s3 + $0xc] sm:$0xf]
      %v733 = vld [vmem:[%s3 + $0x10] sm:$0xf]
      %v734 = vld [vmem:[%s3 + $0x14] sm:$0xf]
      %v735 = vld [vmem:[%s3 + $0x18] sm:$0xf]
      %v736 = vld [vmem:[%s3 + $0x1c] sm:$0xf]
      %v737 = vld [vmem:[%s3 + $0x20] sm:$0xf]
      %v738 = vld [vmem:[%s3 + $0x24] sm:$0xf]
      %v739 = vld [vmem:[%s3 + $0x28] sm:$0xf]
      %v740 = vld [vmem:[%s3 + $0x2c] sm:$0xf]
      %v741 = vld [vmem:[%s3 + $0x30] sm:$0xf]
      %v742 = vld [vmem:[%s3 + $0x34] sm:$0xf]
      %v743 = vld [vmem:[%s3 + $0x38] sm:$0xf]
      %v744 = vld [vmem:[%s3 + $0x3c] sm:$0xf]
      %v745 = vld [vmem:[%s3 + $0x40] sm:$0xf]
      %v746 = vld [vmem:[%s3 + $0x44] sm:$0xf]
      %v747 = vld [vmem:[%s3 + $0x48] sm:$0xf]
      %v748 = vld [vmem:[%s3 + $0x4c] sm:$0xf]
      %v749 = vld [vmem:[%s3 + $0x50] sm:$0xf]
      %v750 = vld [vmem:[%s3 + $0x54] sm:$0xf]
      %v751 = vld [vmem:[%s3 + $0x58] sm:$0xf]
      %v752 = vld [vmem:[%s3 + $0x5c] sm:$0xf]
      %v753 = vld [vmem:[%s3 + $0x60] sm:$0xf]
      %v754 = vld [vmem:[%s3 + $0x64] sm:$0xf]
      %v755 = vld [vmem:[%s3 + $0x68] sm:$0xf]
      %v756 = vld [vmem:[%s3 + $0x6c] sm:$0xf]
      %v757 = vld [vmem:[%s3 + $0x70] sm:$0xf]
      %v758 = vld [vmem:[%s3 + $0x74] sm:$0xf]
      %v759 = vld [vmem:[%s3 + $0x78] sm:$0xf]
      %v760 = vld [vmem:[%s3 + $0x7c] sm:$0xf]
      %v761 = vld [vmem:[%s4] sm:$0x1]
      %v763 = vlaneseq
      %v764 = vshrl.u32 %v763, 7
      %v765 = vsub.s32 0, %v764
      %v766 = vrot.slane %v761, %v765
      %v800 = vunpack.c.l.b16 %v729
      %v801 = vunpack.c.l.b16 %v730
      %v802 = vunpack.c.l.b16 %v731
      %v803 = vunpack.c.l.b16 %v732
      %v804 = vunpack.c.l.b16 %v733
      %v805 = vunpack.c.l.b16 %v734
      %v806 = vunpack.c.l.b16 %v735
      %v807 = vunpack.c.l.b16 %v736
      %v808 = vunpack.c.l.b16 %v737
      %v809 = vunpack.c.l.b16 %v738
      %v810 = vunpack.c.l.b16 %v739
      %v811 = vunpack.c.l.b16 %v740
      %v812 = vunpack.c.l.b16 %v741
      %v813 = vunpack.c.l.b16 %v742
      %v814 = vunpack.c.l.b16 %v743
      %v815 = vunpack.c.l.b16 %v744
      %v816 = vunpack.c.l.b16 %v745
      %v817 = vunpack.c.l.b16 %v746
      %v818 = vunpack.c.l.b16 %v747
      %v819 = vunpack.c.l.b16 %v748
      %v820 = vunpack.c.l.b16 %v749
      %v821 = vunpack.c.l.b16 %v750
      %v822 = vunpack.c.l.b16 %v751
      %v823 = vunpack.c.l.b16 %v752
      %v824 = vunpack.c.l.b16 %v753
      %v825 = vunpack.c.l.b16 %v754
      %v826 = vunpack.c.l.b16 %v755
      %v827 = vunpack.c.l.b16 %v756
      %v828 = vunpack.c.l.b16 %v757
      %v829 = vunpack.c.l.b16 %v758
      %v830 = vunpack.c.l.b16 %v759
      %v831 = vunpack.c.l.b16 %v760
      %v832 = vpack.c.b16 %v801, %v800
      %v833 = vpack.c.b16 %v803, %v802
      %v834 = vpack.c.b16 %v805, %v804
      %v835 = vpack.c.b16 %v807, %v806
      %v836 = vpack.c.b16 %v809, %v808
      %v837 = vpack.c.b16 %v811, %v810
      %v838 = vpack.c.b16 %v813, %v812
      %v839 = vpack.c.b16 %v815, %v814
      %v840 = vpack.c.b16 %v817, %v816
      %v841 = vpack.c.b16 %v819, %v818
      %v842 = vpack.c.b16 %v821, %v820
      %v843 = vpack.c.b16 %v823, %v822
      %v844 = vpack.c.b16 %v825, %v824
      %v845 = vpack.c.b16 %v827, %v826
      %v846 = vpack.c.b16 %v829, %v828
      %v847 = vpack.c.b16 %v831, %v830
      %864 = vmatprep.subr.bf16.mxu0 0
      %865 = vmatpush1.bf16.msra.mxu0 %v832
      %866 = vmatprep.subr.bf16.mxu0 0
      %867 = vmatpush1.bf16.msra.mxu0 %v833
      %868 = vmatprep.subr.bf16.mxu0 0
      %869 = vmatpush1.bf16.msra.mxu0 %v834
      %870 = vmatprep.subr.bf16.mxu0 0
      %871 = vmatpush1.bf16.msra.mxu0 %v835
      %872 = vmatprep.subr.bf16.mxu0 0
      %873 = vmatpush1.bf16.msra.mxu0 %v836
      %874 = vmatprep.subr.bf16.mxu0 0
      %875 = vmatpush1.bf16.msra.mxu0 %v837
      %876 = vmatprep.subr.bf16.mxu0 0
      %877 = vmatpush1.bf16.msra.mxu0 %v838
      %878 = vmatprep.subr.bf16.mxu0 0
      %879 = vmatpush1.bf16.msra.mxu0 %v839
      %880 = vmatprep.subr.bf16.mxu0 0
      %881 = vmatpush1.bf16.msra.mxu0 %v840
      %882 = vmatprep.subr.bf16.mxu0 0
      %883 = vmatpush1.bf16.msra.mxu0 %v841
      %884 = vmatprep.subr.bf16.mxu0 0
      %885 = vmatpush1.bf16.msra.mxu0 %v842
      %886 = vmatprep.subr.bf16.mxu0 0
      %887 = vmatpush1.bf16.msra.mxu0 %v843
      %888 = vmatprep.subr.bf16.mxu0 0
      %889 = vmatpush1.bf16.msra.mxu0 %v844
      %890 = vmatprep.subr.bf16.mxu0 0
      %891 = vmatpush1.bf16.msra.mxu0 %v845
      %892 = vmatprep.subr.bf16.mxu0 0
      %893 = vmatpush1.bf16.msra.mxu0 %v846
      %894 = vmatprep.subr.bf16.mxu0 0
      %895 = vmatpush1.bf16.msra.mxu0 %v847
      %896 = vmatprep.mubr.bf16.mxu0 %v698
      %897 = vmatmul.mubr.bf16.gmra.mrb[0].mxu0 %v697
      %v898 = vpop.f32.mrb[0].mxu0
      %v899 = vadd.f32 %v766, %v898
      %v900 = vpop.f32.mrb[0].mxu0
      %v901 = vpop.f32.mrb[0].mxu0
      %v902 = vadd.f32 %v766, %v901
      %v903 = vpop.f32.mrb[0].mxu0
      %904 = vmatprep.mubr.bf16.mxu0 %v700
      %905 = vmatmul.mubr.bf16.gmra.mrb[0].mxu0 %v699
      %v906 = vpop.f32.mrb[0].mxu0
      %v907 = vadd.f32 %v766, %v906
      %v908 = vpop.f32.mrb[0].mxu0
      %v909 = vpop.f32.mrb[0].mxu0
      %v910 = vadd.f32 %v766, %v909
      %v911 = vpop.f32.mrb[0].mxu0
      %912 = vmatprep.mubr.bf16.mxu0 %v702
      %913 = vmatmul.mubr.bf16.gmra.mrb[0].mxu0 %v701
      %v914 = vpop.f32.mrb[0].mxu0
      %v915 = vadd.f32 %v766, %v914
      %v916 = vpop.f32.mrb[0].mxu0
      %v917 = vpop.f32.mrb[0].mxu0
      %v918 = vadd.f32 %v766, %v917
      %v919 = vpop.f32.mrb[0].mxu0
      %920 = vmatprep.mubr.bf16.mxu0 %v704
      %921 = vmatmul.mubr.bf16.gmra.mrb[0].mxu0 %v703
      %v922 = vpop.f32.mrb[0].mxu0
      %v923 = vadd.f32 %v766, %v922
      %v924 = vpop.f32.mrb[0].mxu0
      %v925 = vpop.f32.mrb[0].mxu0
      %v926 = vadd.f32 %v766, %v925
      %v927 = vpop.f32.mrb[0].mxu0
      %928 = vmatprep.mubr.bf16.mxu0 %v706
      %929 = vmatmul.mubr.bf16.gmra.mrb[0].mxu0 %v705
      %v930 = vpop.f32.mrb[0].mxu0
      %v931 = vadd.f32 %v766, %v930
      %v932 = vpop.f32.mrb[0].mxu0
      %v933 = vpop.f32.mrb[0].mxu0
      %v934 = vadd.f32 %v766, %v933
      %v935 = vpop.f32.mrb[0].mxu0
      %936 = vmatprep.mubr.bf16.mxu0 %v708
      %937 = vmatmul.mubr.bf16.gmra.mrb[0].mxu0 %v707
      %v938 = vpop.f32.mrb[0].mxu0
      %v939 = vadd.f32 %v766, %v938
      %v940 = vpop.f32.mrb[0].mxu0
      %v941 = vpop.f32.mrb[0].mxu0
      %v942 = vadd.f32 %v766, %v941
      %v943 = vpop.f32.mrb[0].mxu0
      %944 = vmatprep.mubr.bf16.mxu0 %v710
      %945 = vmatmul.mubr.bf16.gmra.mrb[0].mxu0 %v709
      %v946 = vpop.f32.mrb[0].mxu0
      %v947 = vadd.f32 %v766, %v946
      %v948 = vpop.f32.mrb[0].mxu0
      %v949 = vpop.f32.mrb[0].mxu0
      %v950 = vadd.f32 %v766, %v949
      %v951 = vpop.f32.mrb[0].mxu0
      %952 = vmatprep.mubr.bf16.mxu0 %v712
      %953 = vmatmul.mubr.bf16.gmra.mrb[0].mxu0 %v711
      %v954 = vpop.f32.mrb[0].mxu0
      %v955 = vadd.f32 %v766, %v954
      %v956 = vpop.f32.mrb[0].mxu0
      %v957 = vpop.f32.mrb[0].mxu0
      %v958 = vadd.f32 %v766, %v957
      %v959 = vpop.f32.mrb[0].mxu0
      %960 = vmatprep.mubr.bf16.mxu0 %v714
      %961 = vmatmul.mubr.bf16.gmra.mrb[0].mxu0 %v713
      %v962 = vpop.f32.mrb[0].mxu0
      %v963 = vadd.f32 %v766, %v962
      %v964 = vpop.f32.mrb[0].mxu0
      %v965 = vpop.f32.mrb[0].mxu0
      %v966 = vadd.f32 %v766, %v965
      %v967 = vpop.f32.mrb[0].mxu0
      %968 = vmatprep.mubr.bf16.mxu0 %v716
      %969 = vmatmul.mubr.bf16.gmra.mrb[0].mxu0 %v715
      %v970 = vpop.f32.mrb[0].mxu0
      %v971 = vadd.f32 %v766, %v970
      %v972 = vpop.f32.mrb[0].mxu0
      %v973 = vpop.f32.mrb[0].mxu0
      %v974 = vadd.f32 %v766, %v973
      %v975 = vpop.f32.mrb[0].mxu0
      %976 = vmatprep.mubr.bf16.mxu0 %v718
      %977 = vmatmul.mubr.bf16.gmra.mrb[0].mxu0 %v717
      %v978 = vpop.f32.mrb[0].mxu0
      %v979 = vadd.f32 %v766, %v978
      %v980 = vpop.f32.mrb[0].mxu0
      %v981 = vpop.f32.mrb[0].mxu0
      %v982 = vadd.f32 %v766, %v981
      %v983 = vpop.f32.mrb[0].mxu0
      %984 = vmatprep.mubr.bf16.mxu0 %v720
      %985 = vmatmul.mubr.bf16.gmra.mrb[0].mxu0 %v719
      %v986 = vpop.f32.mrb[0].mxu0
      %v987 = vadd.f32 %v766, %v986
      %v988 = vpop.f32.mrb[0].mxu0
      %v989 = vpop.f32.mrb[0].mxu0
      %v990 = vadd.f32 %v766, %v989
      %v991 = vpop.f32.mrb[0].mxu0
      %992 = vmatprep.mubr.bf16.mxu0 %v722
      %993 = vmatmul.mubr.bf16.gmra.mrb[0].mxu0 %v721
      %v994 = vpop.f32.mrb[0].mxu0
      %v995 = vadd.f32 %v766, %v994
      %v996 = vpop.f32.mrb[0].mxu0
      %v997 = vpop.f32.mrb[0].mxu0
      %v998 = vadd.f32 %v766, %v997
      %v999 = vpop.f32.mrb[0].mxu0
      %1000 = vmatprep.mubr.bf16.mxu0 %v724
      %1001 = vmatmul.mubr.bf16.gmra.mrb[0].mxu0 %v723
      %v1002 = vpop.f32.mrb[0].mxu0
      %v1003 = vadd.f32 %v766, %v1002
      %v1004 = vpop.f32.mrb[0].mxu0
      %v1005 = vpop.f32.mrb[0].mxu0
      %v1006 = vadd.f32 %v766, %v1005
      %v1007 = vpop.f32.mrb[0].mxu0
      %1008 = vmatprep.mubr.bf16.mxu0 %v726
      %1009 = vmatmul.mubr.bf16.gmra.mrb[0].mxu0 %v725
      %v1010 = vpop.f32.mrb[0].mxu0
      %v1011 = vadd.f32 %v766, %v1010
      %v1012 = vpop.f32.mrb[0].mxu0
      %v1013 = vpop.f32.mrb[0].mxu0
      %v1014 = vadd.f32 %v766, %v1013
      %v1015 = vpop.f32.mrb[0].mxu0
      %1016 = vmatprep.mubr.bf16.mxu0 %v728
      %1017 = vmatmul.mubr.bf16.gmra.mrb[0].mxu0 %v727
      %v1018 = vpop.f32.mrb[0].mxu0
      %v1019 = vadd.f32 %v766, %v1018
      %v1020 = vpop.f32.mrb[0].mxu0
      %v1021 = vpop.f32.mrb[0].mxu0
      %v1022 = vadd.f32 %v766, %v1021
      %v1023 = vpop.f32.mrb[0].mxu0
      %1024 = vdwg.mxu0
      %v1025 = vmax.f32 %v899, 0.0
      %v1026 = vmax.f32 %v902, 0.0
      %v1027 = vmax.f32 %v907, 0.0
      %v1028 = vmax.f32 %v910, 0.0
      %v1029 = vmax.f32 %v915, 0.0
      %v1030 = vmax.f32 %v918, 0.0
      %v1031 = vmax.f32 %v923, 0.0
      %v1032 = vmax.f32 %v926, 0.0
      %v1033 = vmax.f32 %v931, 0.0
      %v1034 = vmax.f32 %v934, 0.0
      %v1035 = vmax.f32 %v939, 0.0
      %v1036 = vmax.f32 %v942, 0.0
      %v1037 = vmax.f32 %v947, 0.0
      %v1038 = vmax.f32 %v950, 0.0
      %v1039 = vmax.f32 %v955, 0.0
      %v1040 = vmax.f32 %v958, 0.0
      %v1041 = vmax.f32 %v963, 0.0
      %v1042 = vmax.f32 %v966, 0.0
      %v1043 = vmax.f32 %v971, 0.0
      %v1044 = vmax.f32 %v974, 0.0
      %v1045 = vmax.f32 %v979, 0.0
      %v1046 = vmax.f32 %v982, 0.0
      %v1047 = vmax.f32 %v987, 0.0
      %v1048 = vmax.f32 %v990, 0.0
      %v1049 = vmax.f32 %v995, 0.0
      %v1050 = vmax.f32 %v998, 0.0
      %v1051 = vmax.f32 %v1003, 0.0
      %v1052 = vmax.f32 %v1006, 0.0
      %v1053 = vmax.f32 %v1011, 0.0
      %v1054 = vmax.f32 %v1014, 0.0
      %v1055 = vmax.f32 %v1019, 0.0
      %v1056 = vmax.f32 %v1022, 0.0
      %v1057 = vpack.c.bf16 %v1026, %v1025
      %v1058 = vpack.c.bf16 %v1028, %v1027
      %v1059 = vpack.c.bf16 %v1030, %v1029
      %v1060 = vpack.c.bf16 %v1032, %v1031
      %v1061 = vpack.c.bf16 %v1034, %v1033
      %v1062 = vpack.c.bf16 %v1036, %v1035
      %v1063 = vpack.c.bf16 %v1038, %v1037
      %v1064 = vpack.c.bf16 %v1040, %v1039
      %v1065 = vpack.c.bf16 %v1042, %v1041
      %v1066 = vpack.c.bf16 %v1044, %v1043
      %v1067 = vpack.c.bf16 %v1046, %v1045
      %v1068 = vpack.c.bf16 %v1048, %v1047
      %v1069 = vpack.c.bf16 %v1050, %v1049
      %v1070 = vpack.c.bf16 %v1052, %v1051
      %v1071 = vpack.c.bf16 %v1054, %v1053
      %v1072 = vpack.c.bf16 %v1056, %v1055
      %v1073 = vld [vmem:[%s5] sm:$0xf]
      %v1074 = vld [vmem:[%s5 + $0x4] sm:$0xf]
      %v1075 = vld [vmem:[%s5 + $0x8] sm:$0xf]
      %v1076 = vld [vmem:[%s5 + $0xc] sm:$0xf]
      %v1077 = vld [vmem:[%s5 + $0x10] sm:$0xf]
      %v1078 = vld [vmem:[%s5 + $0x14] sm:$0xf]
      %v1079 = vld [vmem:[%s5 + $0x18] sm:$0xf]
      %v1080 = vld [vmem:[%s5 + $0x1c] sm:$0xf]
      %v1081 = vld [vmem:[%s5 + $0x20] sm:$0xf]
      %v1082 = vld [vmem:[%s5 + $0x24] sm:$0xf]
      %v1083 = vld [vmem:[%s5 + $0x28] sm:$0xf]
      %v1084 = vld [vmem:[%s5 + $0x2c] sm:$0xf]
      %v1085 = vld [vmem:[%s5 + $0x30] sm:$0xf]
      %v1086 = vld [vmem:[%s5 + $0x34] sm:$0xf]
      %v1087 = vld [vmem:[%s5 + $0x38] sm:$0xf]
      %v1088 = vld [vmem:[%s5 + $0x3c] sm:$0xf]
      %v1089 = vld [vmem:[%s6] sm:$0x1]
      %v1091 = vlaneseq
      %v1092 = vshrl.u32 %v1091, 7
      %v1093 = vsub.s32 0, %v1092
      %v1094 = vrot.slane %v1089, %v1093
      %v1112 = vunpack.c.l.b16 %v1073
      %v1113 = vunpack.c.l.b16 %v1074
      %v1114 = vunpack.c.l.b16 %v1075
      %v1115 = vunpack.c.l.b16 %v1076
      %v1116 = vunpack.c.l.b16 %v1077
      %v1117 = vunpack.c.l.b16 %v1078
      %v1118 = vunpack.c.l.b16 %v1079
      %v1119 = vunpack.c.l.b16 %v1080
      %v1120 = vunpack.c.l.b16 %v1081
      %v1121 = vunpack.c.l.b16 %v1082
      %v1122 = vunpack.c.l.b16 %v1083
      %v1123 = vunpack.c.l.b16 %v1084
      %v1124 = vunpack.c.l.b16 %v1085
      %v1125 = vunpack.c.l.b16 %v1086
      %v1126 = vunpack.c.l.b16 %v1087
      %v1127 = vunpack.c.l.b16 %v1088
      %v1128 = vpack.c.b16 %v1113, %v1112
      %v1129 = vpack.c.b16 %v1115, %v1114
      %v1130 = vpack.c.b16 %v1117, %v1116
      %v1131 = vpack.c.b16 %v1119, %v1118
      %v1132 = vpack.c.b16 %v1121, %v1120
      %v1133 = vpack.c.b16 %v1123, %v1122
      %v1134 = vpack.c.b16 %v1125, %v1124
      %v1135 = vpack.c.b16 %v1127, %v1126
      %1144 = vmatprep.subr.bf16.mxu0 0
      %1145 = vmatpush1.bf16.msra.mxu0 %v1128
      %1146 = vmatprep.subr.bf16.mxu0 0
      %1147 = vmatpush1.bf16.msra.mxu0 %v1129
      %1148 = vmatprep.subr.bf16.mxu0 0
      %1149 = vmatpush1.bf16.msra.mxu0 %v1130
      %1150 = vmatprep.subr.bf16.mxu0 0
      %1151 = vmatpush1.bf16.msra.mxu0 %v1131
      %1152 = vmatprep.subr.bf16.mxu0 0
      %1153 = vmatpush1.bf16.msra.mxu0 %v1132
      %1154 = vmatprep.subr.bf16.mxu0 0
      %1155 = vmatpush1.bf16.msra.mxu0 %v1133
      %1156 = vmatprep.subr.bf16.mxu0 0
      %1157 = vmatpush1.bf16.msra.mxu0 %v1134
      %1158 = vmatprep.subr.bf16.mxu0 0
      %1159 = vmatpush1.bf16.msra.mxu0 %v1135
      %1160 = vmatprep.subr.bf16.mxu0 0
      %1161 = vmatpush1.bf16.msra.mxu0 0
      %1162 = vmatprep.subr.bf16.mxu0 0
      %1163 = vmatpush1.bf16.msra.mxu0 0
      %1164 = vmatprep.subr.bf16.mxu0 0
      %1165 = vmatpush1.bf16.msra.mxu0 0
      %1166 = vmatprep.subr.bf16.mxu0 0
      %1167 = vmatpush1.bf16.msra.mxu0 0
      %1168 = vmatprep.subr.bf16.mxu0 0
      %1169 = vmatpush1.bf16.msra.mxu0 0
      %1170 = vmatprep.subr.bf16.mxu0 0
      %1171 = vmatpush1.bf16.msra.mxu0 0
      %1172 = vmatprep.subr.bf16.mxu0 0
      %1173 = vmatpush1.bf16.msra.mxu0 0
      %1174 = vmatprep.subr.bf16.mxu0 0
      %1175 = vmatpush1.bf16.msra.mxu0 0
      %1176 = vmatprep.mubr.bf16.mxu0 0
      %1177 = vmatmul.mubr.bf16.gmra.mrb[0].mxu0 %v1057
      %v1178 = vpop.f32.mrb[0].mxu0
      %v1179 = vadd.f32 %v1094, %v1178
      %v1180 = vpop.f32.mrb[0].mxu0
      %v1181 = vpop.f32.mrb[0].mxu0
      %v1182 = vadd.f32 %v1094, %v1181
      %v1183 = vpop.f32.mrb[0].mxu0
      %1184 = vmatprep.mubr.bf16.mxu0 0
      %1185 = vmatmul.mubr.bf16.gmra.mrb[0].mxu0 %v1058
      %v1186 = vpop.f32.mrb[0].mxu0
      %v1187 = vadd.f32 %v1094, %v1186
      %v1188 = vpop.f32.mrb[0].mxu0
      %v1189 = vpop.f32.mrb[0].mxu0
      %v1190 = vadd.f32 %v1094, %v1189
      %v1191 = vpop.f32.mrb[0].mxu0
      %1192 = vmatprep.mubr.bf16.mxu0 0
      %1193 = vmatmul.mubr.bf16.gmra.mrb[0].mxu0 %v1059
      %v1194 = vpop.f32.mrb[0].mxu0
      %v1195 = vadd.f32 %v1094, %v1194
      %v1196 = vpop.f32.mrb[0].mxu0
      %v1197 = vpop.f32.mrb[0].mxu0
      %v1198 = vadd.f32 %v1094, %v1197
      %v1199 = vpop.f32.mrb[0].mxu0
      %1200 = vmatprep.mubr.bf16.mxu0 0
      %1201 = vmatmul.mubr.bf16.gmra.mrb[0].mxu0 %v1060
      %v1202 = vpop.f32.mrb[0].mxu0
      %v1203 = vadd.f32 %v1094, %v1202
      %v1204 = vpop.f32.mrb[0].mxu0
      %v1205 = vpop.f32.mrb[0].mxu0
      %v1206 = vadd.f32 %v1094, %v1205
      %v1207 = vpop.f32.mrb[0].mxu0
      %1208 = vmatprep.mubr.bf16.mxu0 0
      %1209 = vmatmul.mubr.bf16.gmra.mrb[0].mxu0 %v1061
      %v1210 = vpop.f32.mrb[0].mxu0
      %v1211 = vadd.f32 %v1094, %v1210
      %v1212 = vpop.f32.mrb[0].mxu0
      %v1213 = vpop.f32.mrb[0].mxu0
      %v1214 = vadd.f32 %v1094, %v1213
      %v1215 = vpop.f32.mrb[0].mxu0
      %1216 = vmatprep.mubr.bf16.mxu0 0
      %1217 = vmatmul.mubr.bf16.gmra.mrb[0].mxu0 %v1062
      %v1218 = vpop.f32.mrb[0].mxu0
      %v1219 = vadd.f32 %v1094, %v1218
      %v1220 = vpop.f32.mrb[0].mxu0
      %v1221 = vpop.f32.mrb[0].mxu0
      %v1222 = vadd.f32 %v1094, %v1221
      %v1223 = vpop.f32.mrb[0].mxu0
      %1224 = vmatprep.mubr.bf16.mxu0 0
      %1225 = vmatmul.mubr.bf16.gmra.mrb[0].mxu0 %v1063
      %v1226 = vpop.f32.mrb[0].mxu0
      %v1227 = vadd.f32 %v1094, %v1226
      %v1228 = vpop.f32.mrb[0].mxu0
      %v1229 = vpop.f32.mrb[0].mxu0
      %v1230 = vadd.f32 %v1094, %v1229
      %v1231 = vpop.f32.mrb[0].mxu0
      %1232 = vmatprep.mubr.bf16.mxu0 0
      %1233 = vmatmul.mubr.bf16.gmra.mrb[0].mxu0 %v1064
      %v1234 = vpop.f32.mrb[0].mxu0
      %v1235 = vadd.f32 %v1094, %v1234
      %v1236 = vpop.f32.mrb[0].mxu0
      %v1237 = vpop.f32.mrb[0].mxu0
      %v1238 = vadd.f32 %v1094, %v1237
      %v1239 = vpop.f32.mrb[0].mxu0
      %1240 = vmatprep.mubr.bf16.mxu0 0
      %1241 = vmatmul.mubr.bf16.gmra.mrb[0].mxu0 %v1065
      %v1242 = vpop.f32.mrb[0].mxu0
      %v1243 = vadd.f32 %v1094, %v1242
      %v1244 = vpop.f32.mrb[0].mxu0
      %v1245 = vpop.f32.mrb[0].mxu0
      %v1246 = vadd.f32 %v1094, %v1245
      %v1247 = vpop.f32.mrb[0].mxu0
      %1248 = vmatprep.mubr.bf16.mxu0 0
      %1249 = vmatmul.mubr.bf16.gmra.mrb[0].mxu0 %v1066
      %v1250 = vpop.f32.mrb[0].mxu0
      %v1251 = vadd.f32 %v1094, %v1250
      %v1252 = vpop.f32.mrb[0].mxu0
      %v1253 = vpop.f32.mrb[0].mxu0
      %v1254 = vadd.f32 %v1094, %v1253
      %v1255 = vpop.f32.mrb[0].mxu0
      %1256 = vmatprep.mubr.bf16.mxu0 0
      %1257 = vmatmul.mubr.bf16.gmra.mrb[0].mxu0 %v1067
      %v1258 = vpop.f32.mrb[0].mxu0
      %v1259 = vadd.f32 %v1094, %v1258
      %v1260 = vpop.f32.mrb[0].mxu0
      %v1261 = vpop.f32.mrb[0].mxu0
      %v1262 = vadd.f32 %v1094, %v1261
      %v1263 = vpop.f32.mrb[0].mxu0
      %1264 = vmatprep.mubr.bf16.mxu0 0
      %1265 = vmatmul.mubr.bf16.gmra.mrb[0].mxu0 %v1068
      %v1266 = vpop.f32.mrb[0].mxu0
      %v1267 = vadd.f32 %v1094, %v1266
      %v1268 = vpop.f32.mrb[0].mxu0
      %v1269 = vpop.f32.mrb[0].mxu0
      %v1270 = vadd.f32 %v1094, %v1269
      %v1271 = vpop.f32.mrb[0].mxu0
      %1272 = vmatprep.mubr.bf16.mxu0 0
      %1273 = vmatmul.mubr.bf16.gmra.mrb[0].mxu0 %v1069
      %v1274 = vpop.f32.mrb[0].mxu0
      %v1275 = vadd.f32 %v1094, %v1274
      %v1276 = vpop.f32.mrb[0].mxu0
      %v1277 = vpop.f32.mrb[0].mxu0
      %v1278 = vadd.f32 %v1094, %v1277
      %v1279 = vpop.f32.mrb[0].mxu0
      %1280 = vmatprep.mubr.bf16.mxu0 0
      %1281 = vmatmul.mubr.bf16.gmra.mrb[0].mxu0 %v1070
      %v1282 = vpop.f32.mrb[0].mxu0
      %v1283 = vadd.f32 %v1094, %v1282
      %v1284 = vpop.f32.mrb[0].mxu0
      %v1285 = vpop.f32.mrb[0].mxu0
      %v1286 = vadd.f32 %v1094, %v1285
      %v1287 = vpop.f32.mrb[0].mxu0
      %1288 = vmatprep.mubr.bf16.mxu0 0
      %1289 = vmatmul.mubr.bf16.gmra.mrb[0].mxu0 %v1071
      %v1290 = vpop.f32.mrb[0].mxu0
      %v1291 = vadd.f32 %v1094, %v1290
      %v1292 = vpop.f32.mrb[0].mxu0
      %v1293 = vpop.f32.mrb[0].mxu0
      %v1294 = vadd.f32 %v1094, %v1293
      %v1295 = vpop.f32.mrb[0].mxu0
      %1296 = vmatprep.mubr.bf16.mxu0 0
      %1297 = vmatmul.mubr.bf16.gmra.mrb[0].mxu0 %v1072
      %v1298 = vpop.f32.mrb[0].mxu0
      %v1299 = vadd.f32 %v1094, %v1298
      %v1300 = vpop.f32.mrb[0].mxu0
      %v1301 = vpop.f32.mrb[0].mxu0
      %v1302 = vadd.f32 %v1094, %v1301
      %v1303 = vpop.f32.mrb[0].mxu0
      %1304 = vdwg.mxu0
      %1305 = vst.msk [vmem:[%s280] sm:$0xff] %vm391, %v1179
      %1306 = vst.msk [vmem:[%s280 + $0x8] sm:$0xff] %vm391, %v1182
      %1307 = vst.msk [vmem:[%s280 + $0x10] sm:$0xff] %vm391, %v1187
      %1308 = vst.msk [vmem:[%s280 + $0x18] sm:$0xff] %vm391, %v1190
      %1309 = vst.msk [vmem:[%s280 + $0x20] sm:$0xff] %vm391, %v1195
      %1310 = vst.msk [vmem:[%s280 + $0x28] sm:$0xff] %vm391, %v1198
      %1311 = vst.msk [vmem:[%s280 + $0x30] sm:$0xff] %vm391, %v1203
      %1312 = vst.msk [vmem:[%s280 + $0x38] sm:$0xff] %vm391, %v1206
      %1313 = vst.msk [vmem:[%s280 + $0x40] sm:$0xff] %vm391, %v1211
      %1314 = vst.msk [vmem:[%s280 + $0x48] sm:$0xff] %vm391, %v1214
      %1315 = vst.msk [vmem:[%s280 + $0x50] sm:$0xff] %vm391, %v1219
      %1316 = vst.msk [vmem:[%s280 + $0x58] sm:$0xff] %vm391, %v1222
      %1317 = vst.msk [vmem:[%s280 + $0x60] sm:$0xff] %vm391, %v1227
      %1318 = vst.msk [vmem:[%s280 + $0x68] sm:$0xff] %vm391, %v1230
      %1319 = vst.msk [vmem:[%s280 + $0x70] sm:$0xff] %vm391, %v1235
      %1320 = vst.msk [vmem:[%s280 + $0x78] sm:$0xff] %vm391, %v1238
      %1321 = vst.msk [vmem:[%s280 + $0x80] sm:$0xff] %vm391, %v1243
      %1322 = vst.msk [vmem:[%s280 + $0x88] sm:$0xff] %vm391, %v1246
      %1323 = vst.msk [vmem:[%s280 + $0x90] sm:$0xff] %vm391, %v1251
      %1324 = vst.msk [vmem:[%s280 + $0x98] sm:$0xff] %vm391, %v1254
      %1325 = vst.msk [vmem:[%s280 + $0xa0] sm:$0xff] %vm391, %v1259
      %1326 = vst.msk [vmem:[%s280 + $0xa8] sm:$0xff] %vm391, %v1262
      %1327 = vst.msk [vmem:[%s280 + $0xb0] sm:$0xff] %vm391, %v1267
      %1328 = vst.msk [vmem:[%s280 + $0xb8] sm:$0xff] %vm391, %v1270
      %1329 = vst.msk [vmem:[%s280 + $0xc0] sm:$0xff] %vm391, %v1275
      %1330 = vst.msk [vmem:[%s280 + $0xc8] sm:$0xff] %vm391, %v1278
      %1331 = vst.msk [vmem:[%s280 + $0xd0] sm:$0xff] %vm391, %v1283
      %1332 = vst.msk [vmem:[%s280 + $0xd8] sm:$0xff] %vm391, %v1286
      %1333 = vst.msk [vmem:[%s280 + $0xe0] sm:$0xff] %vm391, %v1291
      %1334 = vst.msk [vmem:[%s280 + $0xe8] sm:$0xff] %vm391, %v1294
      %1335 = vst.msk [vmem:[%s280 + $0xf0] sm:$0xff] %vm391, %v1299
      %1336 = vst.msk [vmem:[%s280 + $0xf8] sm:$0xff] %vm391, %v1302
      %s1337 = smul.u32 32, %s18
      %p1338 = scmp.lt.s32.totalorder %s1337, 63
      %s1339 = scalar_select %p1338, %s1337, 63
      %s1340 = smul.addr %s1339, 8
      %s1341 = scalar_lea.vmem %s7, %s1340
      // Predicated region
      $region49: #{autoencoder_forward.1} parent=47 // pred_check
        %p1342 = pneg %p188
      $region50: #{autoencoder_forward.1} parent=47 // pred_check_branch
        %1344 = sbr.rel (%p1342) target = $region52
      $region51: #{autoencoder_forward.1} parent=47 // pred_region
        %s1345 = smul.u32 32, %s18
      $region52: #{autoencoder_forward.1} parent=47 // pred_fallthru
        _
    $region48: #{autoencoder_forward.1} parent=5 // pred_fallthru
      _
    %p1346 = scmp.le.s32.totalorder 2, %s13
    // Predicated region
    $region53: #{autoencoder_forward.1} parent=5 // pred_check
      %p1347 = pneg %p1346
    $region54: #{autoencoder_forward.1} parent=5 // pred_check_branch
      %1349 = sbr.rel (%p1347) target = $region56
    $region55: #{autoencoder_forward.1} parent=5 // pred_region
      %s1350 = ssub.s32 %s13, 2
      // Predicated region
      $region57: #{autoencoder_forward.1} parent=55 // pred_check
        %p1351 = pneg %p194
      $region58: #{autoencoder_forward.1} parent=55 // pred_check_branch
        %1353 = sbr.rel (%p1351) target = $region60
      $region59: #{autoencoder_forward.1} parent=55 // pred_region
        %s1354 = smul.u32 32, %s19
        %p1355 = scmp.lt.s32.totalorder %s1354, 63
        %s1356 = scalar_select %p1355, %s1354, 63
        %s1357 = smul.addr %s1356, 8
        %s1358 = scalar_lea.vmem %s7, %s1357
      $region60: #{autoencoder_forward.1} parent=55 // pred_fallthru
        _
    $region56: #{autoencoder_forward.1} parent=5 // pred_fallthru
      _
  $region6: #{autoencoder_forward.1} parent=0 // loop_footer
    %s17 = sadd.s32 1, %s13
  $region7: #{autoencoder_forward.1} parent=0 // loop_footer_branch
    %12 = sbr.rel target = $region3
  $region8: #{autoencoder_forward.1} parent=0 // loop_exit
    _

</llo_original>
